<compile_context>
chip_gen: v7x
topology: tpu7x:2x2x1
jax: 0.10.0
libtpu: 0.0.40
codegen_flags: <defaults>
</compile_context>

<pallas_src>
import functools

import jax
import jax.numpy as jnp
from jax import lax
from jax.experimental import pallas as pl
from jax.experimental.pallas import tpu as pltpu


def _tvloss3d_kernel(x_ref, y_ref, out_ref, *, D, H, W):
    # x_ref / y_ref: (TBC, D, H*W) block ; out_ref: (1, 8, 128) partial sums
    HW = H * W
    x = x_ref[...].astype(jnp.float32)
    y = y_ref[...].astype(jnp.float32)

    # ---- L2 term: sum((x - y)^2) over the block ----
    dxy = x - y
    l2_sum = jnp.sum(dxy * dxy)

    # ---- Small validity masks (shape (1, D, HW): a couple of vregs, NOT a
    #      full (TBC, D, HW) temporary).  Applied via one broadcast multiply.
    f = lax.broadcasted_iota(jnp.int32, (1, D, HW), 2)        # folded lane idx
    dsub = lax.broadcasted_iota(jnp.int32, (1, D, HW), 1)     # depth (sublane)
    mask_d = (dsub < (D - 1)).astype(jnp.float32)             # d neighbour valid
    mask_h = (f < (H - 1) * W).astype(jnp.float32)            # h < H-1
    if W & (W - 1) == 0:                                      # power-of-two path
        w_idx = jnp.bitwise_and(f, W - 1)
    else:
        w_idx = f % W
    mask_w = (w_idx != (W - 1)).astype(jnp.float32)           # w < W-1

    # ---- Depth differences: sublane roll (XLU), x_dn[:,d,:] = x[:,(d+1)%D,:]
    x_dn = pltpu.roll(x, shift=D - 1, axis=1)
    dd = x_dn - x
    d_sum = jnp.sum(dd * dd * mask_d)

    # ---- H differences on folded lane axis f = h*W + w (neighbour at f + W)
    x_hn = pltpu.roll(x, shift=HW - W, axis=2)                # [f] <- x[(f+W)%HW]
    dh = x_hn - x
    h_sum = jnp.sum(dh * dh * mask_h)

    # ---- W differences (neighbour at f + 1)
    x_wn = pltpu.roll(x, shift=HW - 1, axis=2)                # [f] <- x[(f+1)%HW]
    dw = x_wn - x
    w_sum = jnp.sum(dw * dw * mask_w)

    # ---- Lane-dense partial-sum tile: [l2, d, h, w] in row 0, lanes 0..3 ----
    row = lax.broadcasted_iota(jnp.int32, (1, 8, 128), 1)
    lane = lax.broadcasted_iota(jnp.int32, (1, 8, 128), 2)
    first = row == 0
    zero = jnp.float32(0.0)
    out = jnp.where(first & (lane == 0), l2_sum,
          jnp.where(first & (lane == 1), d_sum,
          jnp.where(first & (lane == 2), h_sum,
          jnp.where(first & (lane == 3), w_sum, zero))))
    out_ref[...] = out


def _vmem_limit_bytes():
    """Generation-aware scoped-VMEM limit: ~3/4 of physical, capped at 64 MiB.

    v5e/v6e (128 MiB physical) -> 64 MiB; v7x (64 MiB physical) -> 48 MiB.
    Falls back to the v7x-safe 48 MiB if hardware info is unavailable.
    """
    phys = None
    try:
        info = pltpu.get_tpu_info()
        phys = int(getattr(info, "vmem_capacity_bytes", 0)) or None
    except Exception:
        phys = None
    if not phys:
        phys = 64 * 1024 * 1024
    return max(16 * 1024 * 1024, min(64 * 1024 * 1024, (3 * phys) // 4))


def _pick_tbc(BC, slice_f32_bytes, vmem_limit_bytes):
    """Largest divisor of BC that fits the VMEM budget and keeps >=4 grid steps.

    Divisor-of-BC choice => no jnp.pad (no extra HBM copy) and no ragged tail.
    Factor 8 ~= 2 inputs x 2 pipeline buffers + ~4 live f32 temporaries.
    """
    budget = (3 * vmem_limit_bytes) // 4
    factor = 8
    max_tbc = max(1, budget // (factor * slice_f32_bytes))
    target_blocks = min(BC, 4)          # >=2 for DMA/compute overlap, 4 helps v7x
    cap = max(1, min(max_tbc, BC // target_blocks))
    cap = min(cap, BC)
    for d in range(cap, 0, -1):
        if BC % d == 0:
            return d
    return 1
    # TODO(synk): for huge prime-ish BC this degrades to tbc=1; handle the
    # ragged tail with an in-kernel leading-axis mask instead if that matters.


def tv_loss_3d(output, truth, TV_weight=1.0):
    """Matches TVLoss3D.forward (intended axis-aligned diffs, literal counts)."""
    N, C, D, H, W = output.shape
    BC = N * C
    HW = H * W

    x = output.reshape(BC, D, HW)
    y = truth.reshape(BC, D, HW)

    vmem_limit = _vmem_limit_bytes()
    slice_f32_bytes = D * HW * 4
    tbc = _pick_tbc(BC, slice_f32_bytes, vmem_limit)
    num_blocks = BC // tbc

    kernel = functools.partial(_tvloss3d_kernel, D=D, H=H, W=W)

    partials = pl.pallas_call(
        kernel,
        out_shape=jax.ShapeDtypeStruct((num_blocks, 8, 128), jnp.float32),
        grid_spec=pltpu.PrefetchScalarGridSpec(
            num_scalar_prefetch=0,
            grid=(num_blocks,),
            in_specs=[
                pl.BlockSpec((tbc, D, HW), lambda i: (i, 0, 0)),
                pl.BlockSpec((tbc, D, HW), lambda i: (i, 0, 0)),
            ],
            out_specs=pl.BlockSpec((1, 8, 128), lambda i: (i, 0, 0)),
        ),
        compiler_params=pltpu.CompilerParams(
            dimension_semantics=("parallel",),
            vmem_limit_bytes=vmem_limit,
        ),
    )(x, y)
    # TODO(synk): for very large D*H*W (a single (1, D, H*W) slice exceeding
    # the VMEM budget) add H-tiling with a 1-row halo; not needed here.

    sums = jnp.sum(partials, axis=0)          # (8, 128) cross-block reduce
    l2_sum = sums[0, 0]
    d_tv = sums[0, 1]
    h_tv = sums[0, 2]
    w_tv = sums[0, 3]

    # Literal `_tensor_size` normalizers (dims 1..3 of the sliced tensor).
    count_d = C * (D - 1) * H
    count_h = C * D * (H - 1)
    count_w = C * D * H

    l2_loss = l2_sum / (C * D * H * N)
    tv_loss = (d_tv / count_d + h_tv / count_h + w_tv / count_w) / N
    return l2_loss + TV_weight * tv_loss


def _ref_tvloss3d(output, truth, TV_weight=1.0):
    """Pure-JAX reference with the same (intended-diff, literal-count) semantics."""
    N, C, D, H, W = output.shape
    o = output.astype(jnp.float32)
    t = truth.astype(jnp.float32)
    d_tv = jnp.sum((o[:, :, 1:, :, :] - o[:, :, :-1, :, :]) ** 2)
    h_tv = jnp.sum((o[:, :, :, 1:, :] - o[:, :, :, :-1, :]) ** 2)
    w_tv = jnp.sum((o[:, :, :, :, 1:] - o[:, :, :, :, :-1]) ** 2)
    count_d = C * (D - 1) * H
    count_h = C * D * (H - 1)
    count_w = C * D * H
    l2_loss = jnp.sum((o - t) ** 2) / (C * D * H * N)
    tv_loss = (d_tv / count_d + h_tv / count_h + w_tv / count_w) / N
    return l2_loss + TV_weight * tv_loss


if __name__ == "__main__":
    key = jax.random.PRNGKey(0)
    k1, k2 = jax.random.split(key)
    N, C, D, H, W = 2, 4, 8, 16, 16
    output = jax.random.normal(k1, (N, C, D, H, W), dtype=jnp.float32)
    truth = jax.random.normal(k2, (N, C, D, H, W), dtype=jnp.float32)

    loss = tv_loss_3d(output, truth)
    loss = jax.block_until_ready(loss)

    ref = _ref_tvloss3d(output, truth)
    assert jnp.allclose(loss, ref, rtol=1e-4, atol=1e-4), (loss, ref)
    print("KERNEL_OK")
</pallas_src>

<mosaic_0001>
module attributes {stable_mosaic.version = 11 : i64} {
  func.func @_tvloss3d_kernel(%arg0: i32, %arg1: memref<2x8x256xf32, #tpu.memory_space<vmem>>, %arg2: memref<2x8x256xf32, #tpu.memory_space<vmem>>, %arg3: memref<1x8x128xf32, #tpu.memory_space<vmem>>) attributes {dimension_semantics = [#tpu.dimension_semantics<parallel>], iteration_bounds = array<i64: 4>, scalar_prefetch = 0 : i64, scratch_operands = 0 : i64, tpu.core_type = #tpu.core_type<tc>, window_params = [{transform_indices = @transform_0, window_bounds = array<i64: 2, 8, 256>}, {transform_indices = @transform_1, window_bounds = array<i64: 2, 8, 256>}, {transform_indices = @transform_2, window_bounds = array<i64: 1, 8, 128>}]} {
    %c0 = arith.constant 0 : index
    %c0_0 = arith.constant 0 : index
    %c0_1 = arith.constant 0 : index
    %0 = vector.load %arg1[%c0, %c0_0, %c0_1] : memref<2x8x256xf32, #tpu.memory_space<vmem>>, vector<2x8x256xf32>
    %c0_2 = arith.constant 0 : index
    %c0_3 = arith.constant 0 : index
    %c0_4 = arith.constant 0 : index
    %1 = vector.load %arg2[%c0_2, %c0_3, %c0_4] : memref<2x8x256xf32, #tpu.memory_space<vmem>>, vector<2x8x256xf32>
    %2 = arith.subf %0, %1 : vector<2x8x256xf32>
    %3 = arith.mulf %2, %2 : vector<2x8x256xf32>
    %4 = vector.shape_cast %3 : vector<2x8x256xf32> to vector<1x2x8x256xf32>
    %cst = arith.constant dense<0.000000e+00> : vector<1xf32>
    %5 = vector.multi_reduction <add>, %4, %cst [1, 2, 3] : vector<1x2x8x256xf32> to vector<1xf32>
    %6 = vector.shape_cast %5 : vector<1xf32> to vector<1x1x1x1xf32>
    %7 = vector.extract %6[0, 0, 0, 0] : f32 from vector<1x1x1x1xf32>
    %8 = tpu.iota {dimensions = array<i32: 2>} : vector<1x8x256xi32>
    %9 = tpu.iota {dimensions = array<i32: 1>} : vector<1x8x256xi32>
    %c7_i32 = arith.constant 7 : i32
    %10 = vector.broadcast %c7_i32 : i32 to vector<1x8x256xi32>
    %11 = arith.cmpi slt, %9, %10 : vector<1x8x256xi32>
    %12 = arith.extui %11 : vector<1x8x256xi1> to vector<1x8x256xi32>
    %13 = arith.sitofp %12 : vector<1x8x256xi32> to vector<1x8x256xf32>
    %c240_i32 = arith.constant 240 : i32
    %14 = vector.broadcast %c240_i32 : i32 to vector<1x8x256xi32>
    %15 = arith.cmpi slt, %8, %14 : vector<1x8x256xi32>
    %16 = arith.extui %15 : vector<1x8x256xi1> to vector<1x8x256xi32>
    %17 = arith.sitofp %16 : vector<1x8x256xi32> to vector<1x8x256xf32>
    %c15_i32 = arith.constant 15 : i32
    %18 = vector.broadcast %c15_i32 : i32 to vector<1x8x256xi32>
    %19 = arith.andi %8, %18 : vector<1x8x256xi32>
    %c15_i32_5 = arith.constant 15 : i32
    %20 = vector.broadcast %c15_i32_5 : i32 to vector<1x8x256xi32>
    %21 = arith.cmpi ne, %19, %20 : vector<1x8x256xi32>
    %22 = arith.extui %21 : vector<1x8x256xi1> to vector<1x8x256xi32>
    %23 = arith.sitofp %22 : vector<1x8x256xi32> to vector<1x8x256xf32>
    %c7_i32_6 = arith.constant 7 : i32
    %24 = tpu.dynamic_rotate %0 by %c7_i32_6 dim 1 : vector<2x8x256xf32>, i32 -> vector<2x8x256xf32>
    %25 = arith.subf %24, %0 : vector<2x8x256xf32>
    %26 = arith.mulf %25, %25 : vector<2x8x256xf32>
    %27 = vector.broadcast %13 : vector<1x8x256xf32> to vector<2x8x256xf32>
    %28 = arith.mulf %26, %27 : vector<2x8x256xf32>
    %29 = vector.shape_cast %28 : vector<2x8x256xf32> to vector<1x2x8x256xf32>
    %cst_7 = arith.constant dense<0.000000e+00> : vector<1xf32>
    %30 = vector.multi_reduction <add>, %29, %cst_7 [1, 2, 3] : vector<1x2x8x256xf32> to vector<1xf32>
    %31 = vector.shape_cast %30 : vector<1xf32> to vector<1x1x1x1xf32>
    %32 = vector.extract %31[0, 0, 0, 0] : f32 from vector<1x1x1x1xf32>
    %c240_i32_8 = arith.constant 240 : i32
    %33 = tpu.dynamic_rotate %0 by %c240_i32_8 dim 2 : vector<2x8x256xf32>, i32 -> vector<2x8x256xf32>
    %34 = arith.subf %33, %0 : vector<2x8x256xf32>
    %35 = arith.mulf %34, %34 : vector<2x8x256xf32>
    %36 = vector.broadcast %17 : vector<1x8x256xf32> to vector<2x8x256xf32>
    %37 = arith.mulf %35, %36 : vector<2x8x256xf32>
    %38 = vector.shape_cast %37 : vector<2x8x256xf32> to vector<1x2x8x256xf32>
    %cst_9 = arith.constant dense<0.000000e+00> : vector<1xf32>
    %39 = vector.multi_reduction <add>, %38, %cst_9 [1, 2, 3] : vector<1x2x8x256xf32> to vector<1xf32>
    %40 = vector.shape_cast %39 : vector<1xf32> to vector<1x1x1x1xf32>
    %41 = vector.extract %40[0, 0, 0, 0] : f32 from vector<1x1x1x1xf32>
    %c255_i32 = arith.constant 255 : i32
    %42 = tpu.dynamic_rotate %0 by %c255_i32 dim 2 : vector<2x8x256xf32>, i32 -> vector<2x8x256xf32>
    %43 = arith.subf %42, %0 : vector<2x8x256xf32>
    %44 = arith.mulf %43, %43 : vector<2x8x256xf32>
    %45 = vector.broadcast %23 : vector<1x8x256xf32> to vector<2x8x256xf32>
    %46 = arith.mulf %44, %45 : vector<2x8x256xf32>
    %47 = vector.shape_cast %46 : vector<2x8x256xf32> to vector<1x2x8x256xf32>
    %cst_10 = arith.constant dense<0.000000e+00> : vector<1xf32>
    %48 = vector.multi_reduction <add>, %47, %cst_10 [1, 2, 3] : vector<1x2x8x256xf32> to vector<1xf32>
    %49 = vector.shape_cast %48 : vector<1xf32> to vector<1x1x1x1xf32>
    %50 = vector.extract %49[0, 0, 0, 0] : f32 from vector<1x1x1x1xf32>
    %51 = tpu.iota {dimensions = array<i32: 1>} : vector<1x8x128xi32>
    %52 = tpu.iota {dimensions = array<i32: 2>} : vector<1x8x128xi32>
    %c0_i32 = arith.constant 0 : i32
    %53 = vector.broadcast %c0_i32 : i32 to vector<1x8x128xi32>
    %54 = arith.cmpi eq, %51, %53 : vector<1x8x128xi32>
    %c0_i32_11 = arith.constant 0 : i32
    %55 = vector.broadcast %c0_i32_11 : i32 to vector<1x8x128xi32>
    %56 = arith.cmpi eq, %52, %55 : vector<1x8x128xi32>
    %57 = arith.andi %54, %56 : vector<1x8x128xi1>
    %c1_i32 = arith.constant 1 : i32
    %58 = vector.broadcast %c1_i32 : i32 to vector<1x8x128xi32>
    %59 = arith.cmpi eq, %52, %58 : vector<1x8x128xi32>
    %60 = arith.andi %54, %59 : vector<1x8x128xi1>
    %c2_i32 = arith.constant 2 : i32
    %61 = vector.broadcast %c2_i32 : i32 to vector<1x8x128xi32>
    %62 = arith.cmpi eq, %52, %61 : vector<1x8x128xi32>
    %63 = arith.andi %54, %62 : vector<1x8x128xi1>
    %c3_i32 = arith.constant 3 : i32
    %64 = vector.broadcast %c3_i32 : i32 to vector<1x8x128xi32>
    %65 = arith.cmpi eq, %52, %64 : vector<1x8x128xi32>
    %66 = arith.andi %54, %65 : vector<1x8x128xi1>
    %cst_12 = arith.constant 0.000000e+00 : f32
    %67 = vector.broadcast %50 : f32 to vector<1x8x128xf32>
    %68 = vector.broadcast %cst_12 : f32 to vector<1x8x128xf32>
    %69 = arith.select %66, %67, %68 : vector<1x8x128xi1>, vector<1x8x128xf32>
    %70 = vector.broadcast %41 : f32 to vector<1x8x128xf32>
    %71 = arith.select %63, %70, %69 : vector<1x8x128xi1>, vector<1x8x128xf32>
    %72 = vector.broadcast %32 : f32 to vector<1x8x128xf32>
    %73 = arith.select %60, %72, %71 : vector<1x8x128xi1>, vector<1x8x128xf32>
    %74 = vector.broadcast %7 : f32 to vector<1x8x128xf32>
    %75 = arith.select %57, %74, %73 : vector<1x8x128xi1>, vector<1x8x128xf32>
    %c0_13 = arith.constant 0 : index
    %c0_14 = arith.constant 0 : index
    %c0_15 = arith.constant 0 : index
    %76 = vector.load %arg3[%c0_13, %c0_14, %c0_15] : memref<1x8x128xf32, #tpu.memory_space<vmem>>, vector<1x8x128xf32>
    tpu.vector_store %arg3[%c0_13, %c0_14, %c0_15], %75 {strides = array<i32>} : memref<1x8x128xf32, #tpu.memory_space<vmem>>, vector<1x8x128xf32>,
    return
  }
  func.func @transform_0(%arg0: i32) -> (i32, i32, i32) {
    %c0_i32 = arith.constant 0 : i32
    %c0_i32_0 = arith.constant 0 : i32
    %c0_i32_1 = arith.constant 0 : i32
    return %arg0, %c0_i32, %c0_i32_0 : i32, i32, i32
  }
  func.func @transform_1(%arg0: i32) -> (i32, i32, i32) {
    %c0_i32 = arith.constant 0 : i32
    %c0_i32_0 = arith.constant 0 : i32
    %c0_i32_1 = arith.constant 0 : i32
    return %arg0, %c0_i32, %c0_i32_0 : i32, i32, i32
  }
  func.func @transform_2(%arg0: i32) -> (i32, i32, i32) {
    %c0_i32 = arith.constant 0 : i32
    %c0_i32_0 = arith.constant 0 : i32
    %c0_i32_1 = arith.constant 0 : i32
    return %arg0, %c0_i32, %c0_i32_0 : i32, i32, i32
  }
}

</mosaic_0001>

<llo_original>
// kernel: tpu_custom_call.1
$region0: #{tpu_custom_call.1}
  #allocation0 [shape = 'u32[]', space=smem, size = 0x4, offset = 0x4, fixed_abs, tag = 'smem constant byte address 0x4 - core index']
  #allocation1 [shape = 'u32[144,128]{1,0:T(1,128)}', space=vmem, size = 0x12000, scoped, tag = 'internal scratch']
  %s0 = inlined_call_operand.hbm [shape: f32[8,8,256], index: 0, kind: input, shape index: {}]
  %s1 = inlined_call_operand.hbm [shape: f32[8,8,256], index: 1, kind: input, shape index: {}]
  %s2 = inlined_call_operand.hbm [shape: f32[4,8,128], index: 2, kind: output, shape index: {}]
  %s3 = sld [smem:[#allocation0]]
  $region49: #{tpu_custom_call.1} parent=0
    _
  %s5 = ssub.s32 1, %s3
  %s6 = scalar_select 0, %s5, %s3
  $region1: #{tpu_custom_call.1} parent=0
    #allocation2 [shape = 'u8[32768]{0}', space=vmem, size = 0x8000, scoped, tag = 'input window, operand 0']
    #allocation3 [shape = 's32[2]{0}', space=sflag, size = 0x8, scoped, tag = 'scoped memory for tpu_custom_call.1']
    #allocation4 [shape = 's32[2]{0}', space=sflag, size = 0x8, scoped, tag = 'scoped memory for tpu_custom_call.1']
    #allocation5 [shape = 'u8[32768]{0}', space=vmem, size = 0x8000, scoped, tag = 'input window, operand 1']
    #allocation6 [shape = 's32[2]{0}', space=sflag, size = 0x8, scoped, tag = 'scoped memory for tpu_custom_call.1']
    #allocation7 [shape = 'u8[8192]{0}', space=vmem, size = 0x2000, scoped, tag = 'output window, operand 0']
    %7 = vsyncpa [#allocation3], 0
    %s8 = scalar_lea.sflag [#allocation3], 1
    %9 = vsyncpa %s8, 0
    %10 = vsyncpa [#allocation6], 0
    %s11 = scalar_lea.sflag [#allocation6], 1
    %12 = vsyncpa %s11, 0
    %13 = vsyncpa [#allocation4], 0
    %s14 = scalar_lea.sflag [#allocation4], 1
    %15 = vsyncpa %s14, 0
    loop: start=0, step=1, limit=6
    $region2: #{tpu_custom_call.1} parent=1 // loop_pre_header
      _
    $region3: #{tpu_custom_call.1} parent=1 // loop_header
      %s17 = sphi 0, %s21
      %p18 = scmp.ge.s32.totalorder %s17, 6
      %s27 = sphi 0, %s29
      %s30 = sphi 0, %s27
      %s31 = sphi 0, %s30
      %s47 = sphi 0, %s31
      %s53 = sphi 0, %s55
      %s56 = sphi 0, %s53
      %s57 = sphi 0, %s56
      %s73 = sphi 0, %s57
      %s79 = sphi 0, %s81
      %s82 = sphi 0, %s79
      %s83 = sphi 0, %s82
      %s99 = sphi 0, %s83
    $region4: #{tpu_custom_call.1} parent=1 // loop_header_branch
      %20 = sbr.rel (%p18) target = $region8
    $region5: #{tpu_custom_call.1} parent=1 // loop_body
      %s22 = ssub.s32 %s17, 1
      %s23 = ssub.s32 %s17, 2
      %s24 = sadd.s32 %s17, 1
      %s25 = ssub.s32 %s17, %s24
      %p26 = scmp.eq.s32.totalorder %s25, 0
      %s28 = sadd.s32 %s27, 1
      %s29 = scalar_select %p26, %s27, %s28
      %p32 = pneg %p26
      %p33 = scmp.eq.s32.totalorder %s17, 3
      %p34 = por %p32, %p33
      %p35 = scmp.ne.s32.totalorder %s27, %s30
      %p36 = scmp.eq.s32.totalorder %s17, 0
      %p37 = por %p35, %p36
      %p38 = scmp.ne.s32.totalorder %s27, %s30
      %p39 = scmp.eq.s32.totalorder %s22, 3
      %p40 = por %p38, %p39
      %p41 = scmp.ne.s32.totalorder %s30, %s31
      %p42 = scmp.eq.s32.totalorder %s22, 0
      %p43 = por %p41, %p42
      %p44 = scmp.ne.s32.totalorder %s30, %s31
      %p45 = scmp.eq.s32.totalorder %s23, 3
      %p46 = por %p44, %p45
      %p48 = scmp.ne.s32.totalorder %s31, %s47
      %p49 = scmp.eq.s32.totalorder %s23, 0
      %p50 = por %p48, %p49
      %s51 = ssub.s32 %s17, %s24
      %p52 = scmp.eq.s32.totalorder %s51, 0
      %s54 = sadd.s32 %s53, 1
      %s55 = scalar_select %p52, %s53, %s54
      %p58 = pneg %p52
      %p59 = scmp.eq.s32.totalorder %s17, 3
      %p60 = por %p58, %p59
      %p61 = scmp.ne.s32.totalorder %s53, %s56
      %p62 = scmp.eq.s32.totalorder %s17, 0
      %p63 = por %p61, %p62
      %p64 = scmp.ne.s32.totalorder %s53, %s56
      %p65 = scmp.eq.s32.totalorder %s22, 3
      %p66 = por %p64, %p65
      %p67 = scmp.ne.s32.totalorder %s56, %s57
      %p68 = scmp.eq.s32.totalorder %s22, 0
      %p69 = por %p67, %p68
      %p70 = scmp.ne.s32.totalorder %s56, %s57
      %p71 = scmp.eq.s32.totalorder %s23, 3
      %p72 = por %p70, %p71
      %p74 = scmp.ne.s32.totalorder %s57, %s73
      %p75 = scmp.eq.s32.totalorder %s23, 0
      %p76 = por %p74, %p75
      %s77 = ssub.s32 %s17, %s24
      %p78 = scmp.eq.s32.totalorder %s77, 0
      %s80 = sadd.s32 %s79, 1
      %s81 = scalar_select %p78, %s79, %s80
      %p84 = pneg %p78
      %p85 = scmp.eq.s32.totalorder %s17, 3
      %p86 = por %p84, %p85
      %p87 = scmp.ne.s32.totalorder %s79, %s82
      %p88 = scmp.eq.s32.totalorder %s17, 0
      %p89 = por %p87, %p88
      %p90 = scmp.ne.s32.totalorder %s79, %s82
      %p91 = scmp.eq.s32.totalorder %s22, 3
      %p92 = por %p90, %p91
      %p93 = scmp.ne.s32.totalorder %s82, %s83
      %p94 = scmp.eq.s32.totalorder %s22, 0
      %p95 = por %p93, %p94
      %p96 = scmp.ne.s32.totalorder %s82, %s83
      %p97 = scmp.eq.s32.totalorder %s23, 3
      %p98 = por %p96, %p97
      %p100 = scmp.ne.s32.totalorder %s83, %s99
      %p101 = scmp.eq.s32.totalorder %s23, 0
      %p102 = por %p100, %p101
      %p103 = scmp.le.s32.totalorder 1, %s17
      %p104 = scmp.lt.s32.totalorder %s17, 5
      %p105 = pnand %p103, %p104
      %p106 = pneg %p105
      // Predicated region
      $region9: #{tpu_custom_call.1} parent=5 // pred_check
        _
      $region10: #{tpu_custom_call.1} parent=5 // pred_check_branch
        %108 = sbr.rel (%p105) target = $region12
      $region11: #{tpu_custom_call.1} parent=5 // pred_region
        %s109 = ssub.s32 %s17, 1
      $region12: #{tpu_custom_call.1} parent=5 // pred_fallthru
        _
      %p110 = scmp.lt.s32.totalorder %s17, 4
      // Predicated region
      $region13: #{tpu_custom_call.1} parent=5 // pred_check
        %p111 = pneg %p110
      $region14: #{tpu_custom_call.1} parent=5 // pred_check_branch
        %113 = sbr.rel (%p111) target = $region16
      $region15: #{tpu_custom_call.1} parent=5 // pred_region
        // Predicated region
        $region17: #{tpu_custom_call.1} parent=15 // pred_check
          %p114 = pneg %p37
        $region18: #{tpu_custom_call.1} parent=15 // pred_check_branch
          %116 = sbr.rel (%p114) target = $region20
        $region19: #{tpu_custom_call.1} parent=15 // pred_region
          %s117 = sand.u32 %s27, 1
          %s118 = scalar_lea.sflag [#allocation3], %s117
          %s119 = sand.u32 %s27, 1
          %s120 = smul.addr %s119, 32
          %s121 = scalar_lea.vmem [#allocation2], %s120
          %s122 = smul.u32 2, %s17
          %s124 = ssub.s32 512, 512
          %125 = vsyncadd %s118, %s124
          %s126 = smul.addr %s122, 2
          %s127 = smul.addr %s126, 128
          %s128 = scalar_lea.hbm %s0, %s127
          %s129 = sshll.u32 %s121, 4
          %s130 = int_to_ptr.vmem [resolvable:$true] %s129
          %135 = dma.hbm_to_vmem [thread:$0]  %s128, 512, %s130, %s118, 256, 256, 16
        $region20: #{tpu_custom_call.1} parent=15 // pred_fallthru
          _
        // Predicated region
        $region21: #{tpu_custom_call.1} parent=15 // pred_check
          %p136 = pneg %p63
        $region22: #{tpu_custom_call.1} parent=15 // pred_check_branch
          %138 = sbr.rel (%p136) target = $region24
        $region23: #{tpu_custom_call.1} parent=15 // pred_region
          %s139 = sand.u32 %s53, 1
          %s140 = scalar_lea.sflag [#allocation6], %s139
          %s141 = sand.u32 %s53, 1
          %s142 = smul.addr %s141, 32
          %s143 = scalar_lea.vmem [#allocation5], %s142
          %s144 = smul.u32 2, %s17
          %s146 = ssub.s32 512, 512
          %147 = vsyncadd %s140, %s146
          %s148 = smul.addr %s144, 2
          %s149 = smul.addr %s148, 128
          %s150 = scalar_lea.hbm %s1, %s149
          %s151 = sshll.u32 %s143, 4
          %s152 = int_to_ptr.vmem [resolvable:$true] %s151
          %157 = dma.hbm_to_vmem [thread:$0]  %s150, 512, %s152, %s140, 256, 256, 16
        $region24: #{tpu_custom_call.1} parent=15 // pred_fallthru
          _
      $region16: #{tpu_custom_call.1} parent=5 // pred_fallthru
        _
      %p158 = scmp.le.s32.totalorder 1, %s17
      %p159 = scmp.lt.s32.totalorder %s17, 5
      %p160 = pnand %p158, %p159
      %p161 = pneg %p160
      // Predicated region
      $region25: #{tpu_custom_call.1} parent=5 // pred_check
        _
      $region26: #{tpu_custom_call.1} parent=5 // pred_check_branch
        %163 = sbr.rel (%p160) target = $region28
      $region27: #{tpu_custom_call.1} parent=5 // pred_region
        %s164 = ssub.s32 %s17, 1
        %s165 = sand.u32 %s30, 1
        %s166 = scalar_lea.sflag [#allocation3], %s165
        %s167 = sand.u32 %s30, 1
        %s168 = smul.addr %s167, 32
        %s169 = scalar_lea.vmem [#allocation2], %s168
        // Predicated region
        $region29: #{tpu_custom_call.1} parent=27 // pred_check
          %p170 = pneg %p43
        $region30: #{tpu_custom_call.1} parent=27 // pred_check_branch
          %172 = sbr.rel (%p170) target = $region32
        $region31: #{tpu_custom_call.1} parent=27 // pred_region
          %173 = dma.done %s166, 512
        $region32: #{tpu_custom_call.1} parent=27 // pred_fallthru
          _
        %s174 = sand.u32 %s56, 1
        %s175 = scalar_lea.sflag [#allocation6], %s174
        %s176 = sand.u32 %s56, 1
        %s177 = smul.addr %s176, 32
        %s178 = scalar_lea.vmem [#allocation5], %s177
        // Predicated region
        $region33: #{tpu_custom_call.1} parent=27 // pred_check
          %p179 = pneg %p69
        $region34: #{tpu_custom_call.1} parent=27 // pred_check_branch
          %181 = sbr.rel (%p179) target = $region36
        $region35: #{tpu_custom_call.1} parent=27 // pred_region
          %182 = dma.done %s175, 512
        $region36: #{tpu_custom_call.1} parent=27 // pred_fallthru
          _
        %s183 = sand.u32 %s30, 1
        %s184 = scalar_lea.sflag [#allocation3], %s183
        %s185 = sand.u32 %s30, 1
        %s186 = smul.addr %s185, 32
        %s187 = scalar_lea.vmem [#allocation2], %s186
        %p188 = pneg %p43
        %p189 = pneg %p40
        %s190 = sand.u32 %s56, 1
        %s191 = scalar_lea.sflag [#allocation6], %s190
        %s192 = sand.u32 %s56, 1
        %s193 = smul.addr %s192, 32
        %s194 = scalar_lea.vmem [#allocation5], %s193
        %p195 = pneg %p69
        %p196 = pneg %p66
        %p197 = pneg %p95
        %p198 = pneg %p92
        %s199 = sand.u32 %s82, 1
        %s200 = scalar_lea.sflag [#allocation4], %s199
        %s201 = sand.u32 %s82, 1
        %s202 = smul.addr %s201, 8
        %s203 = scalar_lea.vmem [#allocation7], %s202
        %s204 = smul.u32 2, %s22
        %s205 = smul.u32 2, %s22
        %v206 = vld [vmem:[%s169] sm:$0xff]
        %v207 = vld [vmem:[%s169 + $0x8] sm:$0xff]
        %v208 = vld [vmem:[%s169 + $0x10] sm:$0xff]
        %v209 = vld [vmem:[%s169 + $0x18] sm:$0xff]
        %v210 = vld [vmem:[%s178] sm:$0xff]
        %v211 = vld [vmem:[%s178 + $0x8] sm:$0xff]
        %v212 = vld [vmem:[%s178 + $0x10] sm:$0xff]
        %v213 = vld [vmem:[%s178 + $0x18] sm:$0xff]
        %v214 = vsub.f32 %v206, %v210
        %v215 = vsub.f32 %v207, %v211
        %v216 = vsub.f32 %v208, %v212
        %v217 = vsub.f32 %v209, %v213
        %v218 = vmul.f32 %v214, %v214
        %v219 = vmul.f32 %v215, %v215
        %v220 = vmul.f32 %v216, %v216
        %v221 = vmul.f32 %v217, %v217
        %v222 = vadd.f32 %v218, %v219
        %v223 = vadd.f32 %v222, %v220
        %v224 = vadd.f32 %v223, %v221
        %225 = vadd.xlane.f32.xlu0 %v224
        %v226 = vpop.xlane.xlu0 %225
        %v227 = vrot.slane %v226, 4
        %v228 = vadd.f32 %v226, %v227
        %v229 = vrot.slane %v228, 2
        %v230 = vadd.f32 %v228, %v229
        %v231 = vrot.slane %v230, 1
        %v232 = vadd.f32 %v230, %v231
        %s233 = vtos %v232
        %v234 = vlaneseq
        %v235 = vand.u32 %v234, 127
        %v236 = vadd.s32 %v235, 128
        %v237 = vlaneseq
        %v238 = vshrl.u32 %v237, 7
        %vm239 = vcmp.lt.s32.totalorder %v238, 7
        %v240 = vsel %vm239, 1, 0
        %v241 = vcvt.s32.f32 %v240
        %vm242 = vcmp.lt.s32.totalorder %v235, 240
        %vm243 = vcmp.lt.s32.totalorder %v236, 240
        %v244 = vsel %vm242, 1, 0
        %v245 = vsel %vm243, 1, 0
        %v246 = vcvt.s32.f32 %v244
        %v247 = vcvt.s32.f32 %v245
        %v248 = vand.u32 %v235, 15
        %v249 = vand.u32 %v236, 15
        %vm250 = vcmp.ne.s32.totalorder %v248, 15
        %vm251 = vcmp.ne.s32.totalorder %v249, 15
        %v252 = vsel %vm250, 1, 0
        %v253 = vsel %vm251, 1, 0
        %v254 = vcvt.s32.f32 %v252
        %v255 = vcvt.s32.f32 %v253
        %v256 = vrot.slane %v206, 1
        %v257 = vrot.slane %v207, 1
        %v258 = vrot.slane %v208, 1
        %v259 = vrot.slane %v209, 1
        %v260 = vsub.f32 %v256, %v206
        %v261 = vsub.f32 %v257, %v207
        %v262 = vsub.f32 %v258, %v208
        %v263 = vsub.f32 %v259, %v209
        %v264 = vmul.f32 %v260, %v260
        %v265 = vmul.f32 %v261, %v261
        %v266 = vmul.f32 %v262, %v262
        %v267 = vmul.f32 %v263, %v263
        %v268 = vmul.f32 %v264, %v241
        %v269 = vmul.f32 %v265, %v241
        %v270 = vmul.f32 %v266, %v241
        %v271 = vmul.f32 %v267, %v241
        %v272 = vadd.f32 %v268, %v269
        %v273 = vadd.f32 %v272, %v270
        %v274 = vadd.f32 %v273, %v271
        %275 = vadd.xlane.f32.xlu0 %v274
        %v276 = vpop.xlane.xlu0 %275
        %v277 = vrot.slane %v276, 4
        %v278 = vadd.f32 %v276, %v277
        %v279 = vrot.slane %v278, 2
        %v280 = vadd.f32 %v278, %v279
        %v281 = vrot.slane %v280, 1
        %v282 = vadd.f32 %v280, %v281
        %s283 = vtos %v282
        %284 = vrot.lane.b32.xlu0 %v206, 112
        %v285 = vpop.permute.xlu0 %284
        %286 = vrot.lane.b32.xlu0 %v208, 112
        %v287 = vpop.permute.xlu0 %286
        %288 = vrot.lane.b32.xlu0 %v207, 112
        %v289 = vpop.permute.xlu0 %288
        %290 = vrot.lane.b32.xlu0 %v209, 112
        %v291 = vpop.permute.xlu0 %290
        %vm292 = vcmp.lt.s32.totalorder %v235, 112
        %v293 = vsel %vm292, %v285, %v289
        %v294 = vsel %vm292, %v287, %v291
        %v295 = vsel %vm292, %v289, %v285
        %v296 = vsel %vm292, %v291, %v287
        %v297 = vsub.f32 %v293, %v206
        %v298 = vsub.f32 %v295, %v207
        %v299 = vsub.f32 %v294, %v208
        %v300 = vsub.f32 %v296, %v209
        %v301 = vmul.f32 %v297, %v297
        %v302 = vmul.f32 %v298, %v298
        %v303 = vmul.f32 %v299, %v299
        %v304 = vmul.f32 %v300, %v300
        %v305 = vmul.f32 %v301, %v246
        %v306 = vmul.f32 %v302, %v247
        %v307 = vmul.f32 %v303, %v246
        %v308 = vmul.f32 %v304, %v247
        %v309 = vadd.f32 %v305, %v306
        %v310 = vadd.f32 %v309, %v307
        %v311 = vadd.f32 %v310, %v308
        %312 = vadd.xlane.f32.xlu0 %v311
        %v313 = vpop.xlane.xlu0 %312
        %v314 = vrot.slane %v313, 4
        %v315 = vadd.f32 %v313, %v314
        %v316 = vrot.slane %v315, 2
        %v317 = vadd.f32 %v315, %v316
        %v318 = vrot.slane %v317, 1
        %v319 = vadd.f32 %v317, %v318
        %s320 = vtos %v319
        %321 = vrot.lane.b32.xlu0 %v206, 127
        %v322 = vpop.permute.xlu0 %321
        %323 = vrot.lane.b32.xlu0 %v208, 127
        %v324 = vpop.permute.xlu0 %323
        %325 = vrot.lane.b32.xlu0 %v207, 127
        %v326 = vpop.permute.xlu0 %325
        %327 = vrot.lane.b32.xlu0 %v209, 127
        %v328 = vpop.permute.xlu0 %327
        %vm329 = vcmp.lt.s32.totalorder %v235, 127
        %v330 = vsel %vm329, %v322, %v326
        %v331 = vsel %vm329, %v324, %v328
        %v332 = vsel %vm329, %v326, %v322
        %v333 = vsel %vm329, %v328, %v324
        %v334 = vsub.f32 %v330, %v206
        %v335 = vsub.f32 %v332, %v207
        %v336 = vsub.f32 %v331, %v208
        %v337 = vsub.f32 %v333, %v209
        %v338 = vmul.f32 %v334, %v334
        %v339 = vmul.f32 %v335, %v335
        %v340 = vmul.f32 %v336, %v336
        %v341 = vmul.f32 %v337, %v337
        %v342 = vmul.f32 %v338, %v254
        %v343 = vmul.f32 %v339, %v255
        %v344 = vmul.f32 %v340, %v254
        %v345 = vmul.f32 %v341, %v255
        %v346 = vadd.f32 %v342, %v343
        %v347 = vadd.f32 %v346, %v344
        %v348 = vadd.f32 %v347, %v345
        %349 = vadd.xlane.f32.xlu0 %v348
        %v350 = vpop.xlane.xlu0 %349
        %v351 = vrot.slane %v350, 4
        %v352 = vadd.f32 %v350, %v351
        %v353 = vrot.slane %v352, 2
        %v354 = vadd.f32 %v352, %v353
        %v355 = vrot.slane %v354, 1
        %v356 = vadd.f32 %v354, %v355
        %s357 = vtos %v356
        %vm358 = vcmp.eq.s32.totalorder %v238, 0
        %vm359 = vcmp.eq.s32.totalorder %v235, 0
        %vm360 = vmand %vm358, %vm359
        %vm361 = vcmp.eq.s32.totalorder %v235, 1
        %vm362 = vmand %vm358, %vm361
        %vm363 = vcmp.eq.s32.totalorder %v235, 2
        %vm364 = vmand %vm358, %vm363
        %vm365 = vcmp.eq.s32.totalorder %v235, 3
        %vm366 = vmand %vm358, %vm365
        %v367 = vstv %s357
        %v368 = vsel %vm366, %v367, 0.0
        %v369 = vstv %s320
        %v370 = vsel %vm364, %v369, %v368
        %v371 = vstv %s283
        %v372 = vsel %vm362, %v371, %v370
        %v373 = vstv %s233
        %v374 = vsel %vm360, %v373, %v372
        %375 = vst [vmem:[%s203] sm:$0xff] %v374
        %s376 = sand.u32 %s82, 1
        %s377 = scalar_lea.sflag [#allocation4], %s376
        %s378 = sand.u32 %s82, 1
        %s379 = smul.addr %s378, 8
        %s380 = scalar_lea.vmem [#allocation7], %s379
        // Predicated region
        $region37: #{tpu_custom_call.1} parent=27 // pred_check
          %p381 = pneg %p92
        $region38: #{tpu_custom_call.1} parent=27 // pred_check_branch
          %383 = sbr.rel (%p381) target = $region40
        $region39: #{tpu_custom_call.1} parent=27 // pred_region
          %s385 = ssub.s32 128, 128
          %386 = vsyncadd %s377, %s385
          %s387 = smul.addr %s22, 128
          %s388 = scalar_lea.hbm %s2, %s387
          %s390 = sshll.u32 %s380, 4
          %s391 = int_to_ptr.vmem [resolvable:$true] %s390
          %393 = dma.vmem_to_hbm [thread:$0]  %s391, 128, %s388, %s377
        $region40: #{tpu_custom_call.1} parent=27 // pred_fallthru
          _
      $region28: #{tpu_custom_call.1} parent=5 // pred_fallthru
        _
      %p394 = scmp.le.s32.totalorder 2, %s17
      // Predicated region
      $region41: #{tpu_custom_call.1} parent=5 // pred_check
        %p395 = pneg %p394
      $region42: #{tpu_custom_call.1} parent=5 // pred_check_branch
        %397 = sbr.rel (%p395) target = $region44
      $region43: #{tpu_custom_call.1} parent=5 // pred_region
        %s398 = ssub.s32 %s17, 2
        // Predicated region
        $region45: #{tpu_custom_call.1} parent=43 // pred_check
          %p399 = pneg %p98
        $region46: #{tpu_custom_call.1} parent=43 // pred_check_branch
          %401 = sbr.rel (%p399) target = $region48
        $region47: #{tpu_custom_call.1} parent=43 // pred_region
          %s402 = sand.u32 %s83, 1
          %s403 = scalar_lea.sflag [#allocation4], %s402
          %s404 = sand.u32 %s83, 1
          %s405 = smul.addr %s404, 8
          %s406 = scalar_lea.vmem [#allocation7], %s405
          %407 = dma.done %s403, 128
        $region48: #{tpu_custom_call.1} parent=43 // pred_fallthru
          _
      $region44: #{tpu_custom_call.1} parent=5 // pred_fallthru
        _
    $region6: #{tpu_custom_call.1} parent=1 // loop_footer
      %s21 = sadd.s32 1, %s17
    $region7: #{tpu_custom_call.1} parent=1 // loop_footer_branch
      %16 = sbr.rel target = $region3
    $region8: #{tpu_custom_call.1} parent=1 // loop_exit
      _
    %408 = vsyncpa [#allocation3], 1
    %s409 = scalar_lea.sflag [#allocation3], 1
    %410 = vsyncpa %s409, 1
    %411 = vsyncpa [#allocation6], 1
    %s412 = scalar_lea.sflag [#allocation6], 1
    %413 = vsyncpa %s412, 1
    %414 = vsyncpa [#allocation4], 1
    %s415 = scalar_lea.sflag [#allocation4], 1
    %416 = vsyncpa %s415, 1

</llo_original>
